<compile_context>
chip_gen: v7x
topology: tpu7x:2x2x1
jax: 0.10.0
libtpu: 0.0.40
codegen_flags: <defaults>
</compile_context>

<pallas_src>
import functools

import jax
import jax.numpy as jnp
from jax.experimental import pallas as pl
from jax.experimental.pallas import tpu as pltpu

# Layer widths of DNNModel
LAYER_DIMS = [256, 128, 64, 32, 16]
LANE = 128


def _pad_dim(d):
    """Round a layer width up to a full 128-lane multiple (min 128)."""
    return max(LANE, ((d + LANE - 1) // LANE) * LANE)


def _mlp_kernel(x_ref,
                w1_ref, b1_ref,
                w2_ref, b2_ref,
                w3_ref, b3_ref,
                w4_ref, b4_ref,
                w5_ref, b5_ref,
                o_ref):
    """Fused forward pass for one batch tile.

    Five matmuls hit the MXU (bf16 operands, f32 accumulation); bias-add /
    ReLU run on the VPU in f32; activations are re-cast to bf16 between
    layers.  The final store is a lane-dense 128-wide bf16 store (padded
    columns are exactly zero).
    """
    # f32 -> bf16 input cast fused into the kernel (free under MXU/DMA).
    h = x_ref[...].astype(jnp.bfloat16)

    h = jnp.dot(h, w1_ref[...], preferred_element_type=jnp.float32) + b1_ref[...]
    h = jnp.maximum(h, 0.0).astype(jnp.bfloat16)

    h = jnp.dot(h, w2_ref[...], preferred_element_type=jnp.float32) + b2_ref[...]
    h = jnp.maximum(h, 0.0).astype(jnp.bfloat16)

    h = jnp.dot(h, w3_ref[...], preferred_element_type=jnp.float32) + b3_ref[...]
    h = jnp.maximum(h, 0.0).astype(jnp.bfloat16)

    h = jnp.dot(h, w4_ref[...], preferred_element_type=jnp.float32) + b4_ref[...]
    h = jnp.maximum(h, 0.0).astype(jnp.bfloat16)

    # final layer: no activation
    o = jnp.dot(h, w5_ref[...], preferred_element_type=jnp.float32) + b5_ref[...]
    o_ref[...] = o.astype(o_ref.dtype)  # bf16 lane-dense padded store


def pack_params(params, in_dim):
    """Pad narrow layer widths to 128 lanes and cast weights to bf16.

    Call this ONCE (outside the hot loop); the returned pytree is what
    dnn_forward consumes.  Padded weight rows/columns and bias entries are
    exactly zero, so ReLU keeps padded columns at zero and padding cannot
    leak into later layers.
    """
    packed = []
    prev = in_dim  # input dim of layer 1 is left unpadded (full-extent block)
    for (w, b) in params:
        fi, fo = w.shape
        fo_p = _pad_dim(fo)
        w_p = jnp.zeros((prev, fo_p), jnp.bfloat16).at[:fi, :fo].set(
            w.astype(jnp.bfloat16))
        b_p = jnp.zeros((1, fo_p), jnp.float32).at[:, :fo].set(
            b.reshape(1, -1).astype(jnp.float32))
        packed.append((w_p, b_p))
        prev = fo_p
    return packed


@functools.partial(jax.jit, static_argnames=("out_dim", "block_b"))
def dnn_forward(x, packed_params, out_dim=LAYER_DIMS[-1], block_b=1024):
    """x: (B, inputs) float32.  packed_params: output of pack_params().

    Returns (B, out_dim) float32 (a single fused slice+cast of the padded
    bf16 kernel output).
    """
    B, in_dim = x.shape
    out_pad = packed_params[-1][0].shape[1]  # 128

    # ---- batch tile selection -------------------------------------------
    tb = min(block_b, B)
    # v7x megacore: whenever the batch is >= 2*128, make sure there are at
    # least 2 batch blocks so both TensorCores get work; forced tile rounded
    # to a multiple of 128 (harmless on single-TC v5e/v6e).
    if B >= 2 * LANE and pl.cdiv(B, tb) < 2:
        tb = min(B, ((((B + 1) // 2) + LANE - 1) // LANE) * LANE)
    grid = (pl.cdiv(B, tb),)

    # ---- specs ------------------------------------------------------------
    flat_params = []
    in_specs = [pl.BlockSpec((tb, in_dim), lambda i: (i, 0))]  # f32 input tile
    for (w_p, b_p) in packed_params:
        flat_params += [w_p, b_p]
        # Constant index_map -> weights/biases stay resident across the grid.
        in_specs.append(pl.BlockSpec(w_p.shape, lambda i: (0, 0)))
        in_specs.append(pl.BlockSpec(b_p.shape, lambda i: (0, 0)))

    out_specs = pl.BlockSpec((tb, out_pad), lambda i: (i, 0))

    out_padded = pl.pallas_call(
        _mlp_kernel,
        out_shape=jax.ShapeDtypeStruct((B, out_pad), jnp.bfloat16),
        grid=grid,
        in_specs=in_specs,
        out_specs=out_specs,
        compiler_params=pltpu.CompilerParams(
            dimension_semantics=("parallel",),
            vmem_limit_bytes=32 * 1024 * 1024,
        ),
    )(x, *flat_params)

    # One fused pass: read bf16 padded, write f32 compact (B, out_dim).
    return out_padded[:, :out_dim].astype(jnp.float32)


def init_params(key, in_dim):
    """Deterministic PyTorch-style init: U(-1/sqrt(fan_in), 1/sqrt(fan_in)).

    Weights stored as (in, out) = transpose of PyTorch's (out, in).
    """
    params = []
    dims = [in_dim] + LAYER_DIMS
    for fan_in, fan_out in zip(dims[:-1], dims[1:]):
        key, kw, kb = jax.random.split(key, 3)
        bound = 1.0 / (fan_in ** 0.5)
        w = jax.random.uniform(kw, (fan_in, fan_out), jnp.float32, -bound, bound)
        b = jax.random.uniform(kb, (1, fan_out), jnp.float32, -bound, bound)
        params.append((w, b))
    return params


def reference_forward_f32(x, params):
    """Plain-JAX full-f32 reference (matches the PyTorch module semantics)."""
    h = x
    for i, (w, b) in enumerate(params):
        h = h @ w + b
        if i < len(params) - 1:
            h = jnp.maximum(h, 0.0)
    return h


def reference_forward_bf16(x, params):
    """Plain-JAX reference mirroring the kernel's bf16/f32 dtype path
    (including the bf16 output store)."""
    h = x.astype(jnp.bfloat16)
    for i, (w, b) in enumerate(params):
        h = jnp.dot(h, w.astype(jnp.bfloat16),
                    preferred_element_type=jnp.float32) + b.astype(jnp.float32)
        if i < len(params) - 1:
            h = jnp.maximum(h, 0.0).astype(jnp.bfloat16)
    return h.astype(jnp.bfloat16).astype(jnp.float32)


if __name__ == "__main__":
    key = jax.random.PRNGKey(0)
    key, kx = jax.random.split(key)

    batch = 8
    in_dim = 32  # `inputs` argument of DNNModel

    x = jax.random.normal(kx, (batch, in_dim), jnp.float32)
    params = init_params(key, in_dim)

    # Pack (pad + bf16-cast) the weights ONCE, outside the jitted forward.
    packed = pack_params(params, in_dim)

    out = dnn_forward(x, packed)
    out = jax.block_until_ready(out)

    assert out.shape == (batch, 16), out.shape

    # Tight check against a JAX reference using the same bf16/f32 dtype path.
    ref_bf16 = reference_forward_bf16(x, params)
    assert jnp.allclose(out, ref_bf16, atol=2e-3, rtol=2e-3), \
        float(jnp.max(jnp.abs(out - ref_bf16)))

    # Looser sanity check against the full-f32 reference (bf16 rounding only).
    ref_f32 = reference_forward_f32(x, params)
    assert jnp.allclose(out, ref_f32, atol=5e-2, rtol=5e-2), \
        float(jnp.max(jnp.abs(out - ref_f32)))

    print("KERNEL_OK")
</pallas_src>

<mosaic_0001>
module attributes {stable_mosaic.version = 11 : i64} {
  func.func @_mlp_kernel(%arg0: i32, %arg1: memref<8x32xf32, #tpu.memory_space<vmem>>, %arg2: memref<32x256xbf16, #tpu.memory_space<vmem>>, %arg3: memref<1x256xf32, #tpu.memory_space<vmem>>, %arg4: memref<256x128xbf16, #tpu.memory_space<vmem>>, %arg5: memref<1x128xf32, #tpu.memory_space<vmem>>, %arg6: memref<128x128xbf16, #tpu.memory_space<vmem>>, %arg7: memref<1x128xf32, #tpu.memory_space<vmem>>, %arg8: memref<128x128xbf16, #tpu.memory_space<vmem>>, %arg9: memref<1x128xf32, #tpu.memory_space<vmem>>, %arg10: memref<128x128xbf16, #tpu.memory_space<vmem>>, %arg11: memref<1x128xf32, #tpu.memory_space<vmem>>, %arg12: memref<8x128xbf16, #tpu.memory_space<vmem>>) attributes {dimension_semantics = [#tpu.dimension_semantics<parallel>], iteration_bounds = array<i64: 1>, scalar_prefetch = 0 : i64, scratch_operands = 0 : i64, tpu.core_type = #tpu.core_type<tc>, window_params = [{transform_indices = @transform_0, window_bounds = array<i64: 8, 32>}, {pipeline_mode = #tpu.pipeline_mode<synchronous>, transform_indices = @transform_1, window_bounds = array<i64: 32, 256>}, {pipeline_mode = #tpu.pipeline_mode<synchronous>, transform_indices = @transform_2, window_bounds = array<i64: 1, 256>}, {pipeline_mode = #tpu.pipeline_mode<synchronous>, transform_indices = @transform_3, window_bounds = array<i64: 256, 128>}, {pipeline_mode = #tpu.pipeline_mode<synchronous>, transform_indices = @transform_4, window_bounds = array<i64: 1, 128>}, {pipeline_mode = #tpu.pipeline_mode<synchronous>, transform_indices = @transform_5, window_bounds = array<i64: 128, 128>}, {pipeline_mode = #tpu.pipeline_mode<synchronous>, transform_indices = @transform_6, window_bounds = array<i64: 1, 128>}, {pipeline_mode = #tpu.pipeline_mode<synchronous>, transform_indices = @transform_7, window_bounds = array<i64: 128, 128>}, {pipeline_mode = #tpu.pipeline_mode<synchronous>, transform_indices = @transform_8, window_bounds = array<i64: 1, 128>}, {pipeline_mode = #tpu.pipeline_mode<synchronous>, transform_indices = @transform_9, window_bounds = array<i64: 128, 128>}, {pipeline_mode = #tpu.pipeline_mode<synchronous>, transform_indices = @transform_10, window_bounds = array<i64: 1, 128>}, {transform_indices = @transform_11, window_bounds = array<i64: 8, 128>}]} {
    %c0 = arith.constant 0 : index
    %c0_0 = arith.constant 0 : index
    %0 = vector.load %arg1[%c0, %c0_0] : memref<8x32xf32, #tpu.memory_space<vmem>>, vector<8x32xf32>
    %1 = arith.truncf %0 : vector<8x32xf32> to vector<8x32xbf16>
    %c0_1 = arith.constant 0 : index
    %c0_2 = arith.constant 0 : index
    %2 = vector.load %arg2[%c0_1, %c0_2] : memref<32x256xbf16, #tpu.memory_space<vmem>>, vector<32x256xbf16>
    %cst = arith.constant dense<0.000000e+00> : vector<8x256xf32>
    %3 = tpu.matmul %1, %2, %cst {dimension_numbers = #tpu.dot_dimension_numbers<[1], [0], [0], [1], [0, 0, 1, 1], [], []>} : vector<8x32xbf16>, vector<32x256xbf16>, vector<8x256xf32> -> vector<8x256xf32>
    %c0_3 = arith.constant 0 : index
    %c0_4 = arith.constant 0 : index
    %4 = vector.load %arg3[%c0_3, %c0_4] : memref<1x256xf32, #tpu.memory_space<vmem>>, vector<1x256xf32>
    %5 = vector.broadcast %4 : vector<1x256xf32> to vector<8x256xf32>
    %6 = arith.addf %3, %5 : vector<8x256xf32>
    %cst_5 = arith.constant 0.000000e+00 : f32
    %7 = vector.broadcast %cst_5 : f32 to vector<8x256xf32>
    %8 = arith.maximumf %6, %7 : vector<8x256xf32>
    %9 = arith.truncf %8 : vector<8x256xf32> to vector<8x256xbf16>
    %c0_6 = arith.constant 0 : index
    %c0_7 = arith.constant 0 : index
    %10 = vector.load %arg4[%c0_6, %c0_7] : memref<256x128xbf16, #tpu.memory_space<vmem>>, vector<256x128xbf16>
    %cst_8 = arith.constant dense<0.000000e+00> : vector<8x128xf32>
    %11 = tpu.matmul %9, %10, %cst_8 {dimension_numbers = #tpu.dot_dimension_numbers<[1], [0], [0], [1], [0, 0, 1, 1], [], []>} : vector<8x256xbf16>, vector<256x128xbf16>, vector<8x128xf32> -> vector<8x128xf32>
    %c0_9 = arith.constant 0 : index
    %c0_10 = arith.constant 0 : index
    %12 = vector.load %arg5[%c0_9, %c0_10] : memref<1x128xf32, #tpu.memory_space<vmem>>, vector<1x128xf32>
    %13 = vector.broadcast %12 : vector<1x128xf32> to vector<8x128xf32>
    %14 = arith.addf %11, %13 : vector<8x128xf32>
    %cst_11 = arith.constant 0.000000e+00 : f32
    %15 = vector.broadcast %cst_11 : f32 to vector<8x128xf32>
    %16 = arith.maximumf %14, %15 : vector<8x128xf32>
    %17 = arith.truncf %16 : vector<8x128xf32> to vector<8x128xbf16>
    %c0_12 = arith.constant 0 : index
    %c0_13 = arith.constant 0 : index
    %18 = vector.load %arg6[%c0_12, %c0_13] : memref<128x128xbf16, #tpu.memory_space<vmem>>, vector<128x128xbf16>
    %cst_14 = arith.constant dense<0.000000e+00> : vector<8x128xf32>
    %19 = tpu.matmul %17, %18, %cst_14 {dimension_numbers = #tpu.dot_dimension_numbers<[1], [0], [0], [1], [0, 0, 1, 1], [], []>} : vector<8x128xbf16>, vector<128x128xbf16>, vector<8x128xf32> -> vector<8x128xf32>
    %c0_15 = arith.constant 0 : index
    %c0_16 = arith.constant 0 : index
    %20 = vector.load %arg7[%c0_15, %c0_16] : memref<1x128xf32, #tpu.memory_space<vmem>>, vector<1x128xf32>
    %21 = vector.broadcast %20 : vector<1x128xf32> to vector<8x128xf32>
    %22 = arith.addf %19, %21 : vector<8x128xf32>
    %cst_17 = arith.constant 0.000000e+00 : f32
    %23 = vector.broadcast %cst_17 : f32 to vector<8x128xf32>
    %24 = arith.maximumf %22, %23 : vector<8x128xf32>
    %25 = arith.truncf %24 : vector<8x128xf32> to vector<8x128xbf16>
    %c0_18 = arith.constant 0 : index
    %c0_19 = arith.constant 0 : index
    %26 = vector.load %arg8[%c0_18, %c0_19] : memref<128x128xbf16, #tpu.memory_space<vmem>>, vector<128x128xbf16>
    %cst_20 = arith.constant dense<0.000000e+00> : vector<8x128xf32>
    %27 = tpu.matmul %25, %26, %cst_20 {dimension_numbers = #tpu.dot_dimension_numbers<[1], [0], [0], [1], [0, 0, 1, 1], [], []>} : vector<8x128xbf16>, vector<128x128xbf16>, vector<8x128xf32> -> vector<8x128xf32>
    %c0_21 = arith.constant 0 : index
    %c0_22 = arith.constant 0 : index
    %28 = vector.load %arg9[%c0_21, %c0_22] : memref<1x128xf32, #tpu.memory_space<vmem>>, vector<1x128xf32>
    %29 = vector.broadcast %28 : vector<1x128xf32> to vector<8x128xf32>
    %30 = arith.addf %27, %29 : vector<8x128xf32>
    %cst_23 = arith.constant 0.000000e+00 : f32
    %31 = vector.broadcast %cst_23 : f32 to vector<8x128xf32>
    %32 = arith.maximumf %30, %31 : vector<8x128xf32>
    %33 = arith.truncf %32 : vector<8x128xf32> to vector<8x128xbf16>
    %c0_24 = arith.constant 0 : index
    %c0_25 = arith.constant 0 : index
    %34 = vector.load %arg10[%c0_24, %c0_25] : memref<128x128xbf16, #tpu.memory_space<vmem>>, vector<128x128xbf16>
    %cst_26 = arith.constant dense<0.000000e+00> : vector<8x128xf32>
    %35 = tpu.matmul %33, %34, %cst_26 {dimension_numbers = #tpu.dot_dimension_numbers<[1], [0], [0], [1], [0, 0, 1, 1], [], []>} : vector<8x128xbf16>, vector<128x128xbf16>, vector<8x128xf32> -> vector<8x128xf32>
    %c0_27 = arith.constant 0 : index
    %c0_28 = arith.constant 0 : index
    %36 = vector.load %arg11[%c0_27, %c0_28] : memref<1x128xf32, #tpu.memory_space<vmem>>, vector<1x128xf32>
    %37 = vector.broadcast %36 : vector<1x128xf32> to vector<8x128xf32>
    %38 = arith.addf %35, %37 : vector<8x128xf32>
    %39 = arith.truncf %38 : vector<8x128xf32> to vector<8x128xbf16>
    %c0_29 = arith.constant 0 : index
    %c0_30 = arith.constant 0 : index
    %40 = vector.load %arg12[%c0_29, %c0_30] : memref<8x128xbf16, #tpu.memory_space<vmem>>, vector<8x128xbf16>
    tpu.vector_store %arg12[%c0_29, %c0_30], %39 {strides = array<i32>} : memref<8x128xbf16, #tpu.memory_space<vmem>>, vector<8x128xbf16>,
    return
  }
  func.func @transform_0(%arg0: i32) -> (i32, i32) {
    %c0_i32 = arith.constant 0 : i32
    %c0_i32_0 = arith.constant 0 : i32
    return %arg0, %c0_i32 : i32, i32
  }
  func.func @transform_1(%arg0: i32) -> (i32, i32) {
    %c0_i32 = arith.constant 0 : i32
    %c0_i32_0 = arith.constant 0 : i32
    %c0_i32_1 = arith.constant 0 : i32
    return %c0_i32, %c0_i32_0 : i32, i32
  }
  func.func @transform_2(%arg0: i32) -> (i32, i32) {
    %c0_i32 = arith.constant 0 : i32
    %c0_i32_0 = arith.constant 0 : i32
    %c0_i32_1 = arith.constant 0 : i32
    return %c0_i32, %c0_i32_0 : i32, i32
  }
  func.func @transform_3(%arg0: i32) -> (i32, i32) {
    %c0_i32 = arith.constant 0 : i32
    %c0_i32_0 = arith.constant 0 : i32
    %c0_i32_1 = arith.constant 0 : i32
    return %c0_i32, %c0_i32_0 : i32, i32
  }
  func.func @transform_4(%arg0: i32) -> (i32, i32) {
    %c0_i32 = arith.constant 0 : i32
    %c0_i32_0 = arith.constant 0 : i32
    %c0_i32_1 = arith.constant 0 : i32
    return %c0_i32, %c0_i32_0 : i32, i32
  }
  func.func @transform_5(%arg0: i32) -> (i32, i32) {
    %c0_i32 = arith.constant 0 : i32
    %c0_i32_0 = arith.constant 0 : i32
    %c0_i32_1 = arith.constant 0 : i32
    return %c0_i32, %c0_i32_0 : i32, i32
  }
  func.func @transform_6(%arg0: i32) -> (i32, i32) {
    %c0_i32 = arith.constant 0 : i32
    %c0_i32_0 = arith.constant 0 : i32
    %c0_i32_1 = arith.constant 0 : i32
    return %c0_i32, %c0_i32_0 : i32, i32
  }
  func.func @transform_7(%arg0: i32) -> (i32, i32) {
    %c0_i32 = arith.constant 0 : i32
    %c0_i32_0 = arith.constant 0 : i32
    %c0_i32_1 = arith.constant 0 : i32
    return %c0_i32, %c0_i32_0 : i32, i32
  }
  func.func @transform_8(%arg0: i32) -> (i32, i32) {
    %c0_i32 = arith.constant 0 : i32
    %c0_i32_0 = arith.constant 0 : i32
    %c0_i32_1 = arith.constant 0 : i32
    return %c0_i32, %c0_i32_0 : i32, i32
  }
  func.func @transform_9(%arg0: i32) -> (i32, i32) {
    %c0_i32 = arith.constant 0 : i32
    %c0_i32_0 = arith.constant 0 : i32
    %c0_i32_1 = arith.constant 0 : i32
    return %c0_i32, %c0_i32_0 : i32, i32
  }
  func.func @transform_10(%arg0: i32) -> (i32, i32) {
    %c0_i32 = arith.constant 0 : i32
    %c0_i32_0 = arith.constant 0 : i32
    %c0_i32_1 = arith.constant 0 : i32
    return %c0_i32, %c0_i32_0 : i32, i32
  }
  func.func @transform_11(%arg0: i32) -> (i32, i32) {
    %c0_i32 = arith.constant 0 : i32
    %c0_i32_0 = arith.constant 0 : i32
    return %arg0, %c0_i32 : i32, i32
  }
}

</mosaic_0001>

<llo_original>
// kernel: dnn_forward.1
$region0: #{dnn_forward.1}
  #allocation0 [shape = 'u32[]', space=smem, size = 0x4, offset = 0x4, fixed_abs, tag = 'smem constant byte address 0x4 - core index']
  #allocation1 [shape = 'u32[144,128]{1,0:T(1,128)}', space=vmem, size = 0x12000, scoped, tag = 'internal scratch']
  %s0 = inlined_call_operand.hbm [shape: f32[8,32], index: 0, kind: input, shape index: {}]
  %s1 = inlined_call_operand.hbm [shape: bf16[32,256], index: 1, kind: input, shape index: {}]
  %s2 = inlined_call_operand.vmem [shape: f32[1,256], index: 2, kind: input, shape index: {}]
  %s3 = inlined_call_operand.hbm [shape: bf16[256,128], index: 3, kind: input, shape index: {}]
  %s4 = inlined_call_operand.vmem [shape: f32[1,128], index: 4, kind: input, shape index: {}]
  %s5 = inlined_call_operand.hbm [shape: bf16[128,128], index: 5, kind: input, shape index: {}]
  %s6 = inlined_call_operand.vmem [shape: f32[1,128], index: 6, kind: input, shape index: {}]
  %s7 = inlined_call_operand.hbm [shape: bf16[128,128], index: 7, kind: input, shape index: {}]
  %s8 = inlined_call_operand.vmem [shape: f32[1,128], index: 8, kind: input, shape index: {}]
  %s9 = inlined_call_operand.hbm [shape: bf16[128,128], index: 9, kind: input, shape index: {}]
  %s10 = inlined_call_operand.vmem [shape: f32[1,128], index: 10, kind: input, shape index: {}]
  %s11 = inlined_call_operand.vmem [shape: bf16[8,128], index: 11, kind: output, shape index: {}]
  %s12 = sld [smem:[#allocation0]]
  $region78: #{dnn_forward.1} parent=0
    _
  %s14 = ssub.s32 1, %s12
  %s15 = scalar_select 0, %s14, %s12
  $region1: #{dnn_forward.1} parent=0
    #allocation2 [shape = 'u8[4096]{0}', space=vmem, size = 0x1000, scoped, tag = 'input window, operand 0, single buffered']
    #allocation3 [shape = 's32[1]{0}', space=sflag, size = 0x4, scoped, tag = 'scoped memory for dnn_forward.1']
    #allocation4 [shape = 'u8[16384]{0}', space=vmem, size = 0x4000, scoped, tag = 'input window, operand 1, single buffered']
    #allocation5 [shape = 's32[1]{0}', space=sflag, size = 0x4, scoped, tag = 'scoped memory for dnn_forward.1']
    #allocation6 [shape = 'u8[65536]{0}', space=vmem, size = 0x10000, scoped, tag = 'input window, operand 3, single buffered']
    #allocation7 [shape = 'u8[32768]{0}', space=vmem, size = 0x8000, scoped, tag = 'input window, operand 5, single buffered']
    #allocation8 [shape = 's32[1]{0}', space=sflag, size = 0x4, scoped, tag = 'scoped memory for dnn_forward.1']
    #allocation9 [shape = 'u8[32768]{0}', space=vmem, size = 0x8000, scoped, tag = 'input window, operand 7, single buffered']
    #allocation10 [shape = 'u8[32768]{0}', space=vmem, size = 0x8000, scoped, tag = 'input window, operand 9, single buffered']
    #allocation11 [shape = 's32[1]{0}', space=sflag, size = 0x4, scoped, tag = 'scoped memory for dnn_forward.1']
    %16 = vsyncpa [#allocation3], 0
    %17 = vsyncpa [#allocation5], 0
    %18 = vsyncpa [#allocation8], 0
    %19 = vsyncpa [#allocation11], 0
    // Predicated region
    $region2: #{dnn_forward.1} parent=1 // pred_check
      _
    $region3: #{dnn_forward.1} parent=1 // pred_check_branch
      %21 = sbr.rel (0) target = $region5
    $region4: #{dnn_forward.1} parent=1 // pred_region
      %s23 = ssub.s32 128, 128
      %24 = vsyncadd [#allocation3], %s23
      %s26 = sshll.u32 [#allocation2], 4
      %s27 = int_to_ptr.vmem [resolvable:$true] %s26
      %29 = dma.hbm_to_vmem [thread:$0]  %s0, 128, %s27, [#allocation3]
    $region5: #{dnn_forward.1} parent=1 // pred_fallthru
      _
    // Predicated region
    $region6: #{dnn_forward.1} parent=1 // pred_check
      _
    $region7: #{dnn_forward.1} parent=1 // pred_check_branch
      %31 = sbr.rel (0) target = $region9
    $region8: #{dnn_forward.1} parent=1 // pred_region
      %s33 = ssub.s32 512, 512
      %34 = vsyncadd [#allocation5], %s33
      %s35 = sshll.u32 [#allocation4], 4
      %s36 = int_to_ptr.vmem [resolvable:$true] %s35
      %41 = dma.hbm_to_vmem [thread:$0]  %s1, 512, %s36, [#allocation5], 128, 128, 8
    $region9: #{dnn_forward.1} parent=1 // pred_fallthru
      _
    // Predicated region
    $region10: #{dnn_forward.1} parent=1 // pred_check
      _
    $region11: #{dnn_forward.1} parent=1 // pred_check_branch
      %43 = sbr.rel (0) target = $region13
    $region12: #{dnn_forward.1} parent=1 // pred_region
      _
    $region13: #{dnn_forward.1} parent=1 // pred_fallthru
      _
    // Predicated region
    $region14: #{dnn_forward.1} parent=1 // pred_check
      _
    $region15: #{dnn_forward.1} parent=1 // pred_check_branch
      %45 = sbr.rel (0) target = $region17
    $region16: #{dnn_forward.1} parent=1 // pred_region
      %s47 = ssub.s32 2048, 2048
      %48 = vsyncadd [#allocation5], %s47
      %s49 = sshll.u32 [#allocation6], 4
      %s50 = int_to_ptr.vmem [resolvable:$true] %s49
      %55 = dma.hbm_to_vmem [thread:$0]  %s3, 2048, %s50, [#allocation5], 64, 64, 4
    $region17: #{dnn_forward.1} parent=1 // pred_fallthru
      _
    // Predicated region
    $region18: #{dnn_forward.1} parent=1 // pred_check
      _
    $region19: #{dnn_forward.1} parent=1 // pred_check_branch
      %57 = sbr.rel (0) target = $region21
    $region20: #{dnn_forward.1} parent=1 // pred_region
      _
    $region21: #{dnn_forward.1} parent=1 // pred_fallthru
      _
    // Predicated region
    $region22: #{dnn_forward.1} parent=1 // pred_check
      _
    $region23: #{dnn_forward.1} parent=1 // pred_check_branch
      %59 = sbr.rel (0) target = $region25
    $region24: #{dnn_forward.1} parent=1 // pred_region
      %s61 = ssub.s32 1024, 1024
      %62 = vsyncadd [#allocation8], %s61
      %s63 = sshll.u32 [#allocation7], 4
      %s64 = int_to_ptr.vmem [resolvable:$true] %s63
      %69 = dma.hbm_to_vmem [thread:$0]  %s5, 1024, %s64, [#allocation8], 64, 64, 4
    $region25: #{dnn_forward.1} parent=1 // pred_fallthru
      _
    // Predicated region
    $region26: #{dnn_forward.1} parent=1 // pred_check
      _
    $region27: #{dnn_forward.1} parent=1 // pred_check_branch
      %71 = sbr.rel (0) target = $region29
    $region28: #{dnn_forward.1} parent=1 // pred_region
      _
    $region29: #{dnn_forward.1} parent=1 // pred_fallthru
      _
    // Predicated region
    $region30: #{dnn_forward.1} parent=1 // pred_check
      _
    $region31: #{dnn_forward.1} parent=1 // pred_check_branch
      %73 = sbr.rel (0) target = $region33
    $region32: #{dnn_forward.1} parent=1 // pred_region
      %s75 = ssub.s32 1024, 1024
      %76 = vsyncadd [#allocation8], %s75
      %s77 = sshll.u32 [#allocation9], 4
      %s78 = int_to_ptr.vmem [resolvable:$true] %s77
      %83 = dma.hbm_to_vmem [thread:$0]  %s7, 1024, %s78, [#allocation8], 64, 64, 4
    $region33: #{dnn_forward.1} parent=1 // pred_fallthru
      _
    // Predicated region
    $region34: #{dnn_forward.1} parent=1 // pred_check
      _
    $region35: #{dnn_forward.1} parent=1 // pred_check_branch
      %85 = sbr.rel (0) target = $region37
    $region36: #{dnn_forward.1} parent=1 // pred_region
      _
    $region37: #{dnn_forward.1} parent=1 // pred_fallthru
      _
    // Predicated region
    $region38: #{dnn_forward.1} parent=1 // pred_check
      _
    $region39: #{dnn_forward.1} parent=1 // pred_check_branch
      %87 = sbr.rel (0) target = $region41
    $region40: #{dnn_forward.1} parent=1 // pred_region
      %s89 = ssub.s32 1024, 1024
      %90 = vsyncadd [#allocation11], %s89
      %s91 = sshll.u32 [#allocation10], 4
      %s92 = int_to_ptr.vmem [resolvable:$true] %s91
      %97 = dma.hbm_to_vmem [thread:$0]  %s9, 1024, %s92, [#allocation11], 64, 64, 4
    $region41: #{dnn_forward.1} parent=1 // pred_fallthru
      _
    // Predicated region
    $region42: #{dnn_forward.1} parent=1 // pred_check
      _
    $region43: #{dnn_forward.1} parent=1 // pred_check_branch
      %99 = sbr.rel (0) target = $region45
    $region44: #{dnn_forward.1} parent=1 // pred_region
      _
    $region45: #{dnn_forward.1} parent=1 // pred_fallthru
      _
    // Predicated region
    $region46: #{dnn_forward.1} parent=1 // pred_check
      _
    $region47: #{dnn_forward.1} parent=1 // pred_check_branch
      %101 = sbr.rel (0) target = $region49
    $region48: #{dnn_forward.1} parent=1 // pred_region
      %102 = dma.done [#allocation3], 128
    $region49: #{dnn_forward.1} parent=1 // pred_fallthru
      _
    // Predicated region
    $region50: #{dnn_forward.1} parent=1 // pred_check
      _
    $region51: #{dnn_forward.1} parent=1 // pred_check_branch
      %104 = sbr.rel (0) target = $region53
    $region52: #{dnn_forward.1} parent=1 // pred_region
      %105 = dma.done [#allocation5], 512
    $region53: #{dnn_forward.1} parent=1 // pred_fallthru
      _
    // Predicated region
    $region54: #{dnn_forward.1} parent=1 // pred_check
      _
    $region55: #{dnn_forward.1} parent=1 // pred_check_branch
      %107 = sbr.rel (0) target = $region57
    $region56: #{dnn_forward.1} parent=1 // pred_region
      %108 = dma.done [#allocation5], 2048
    $region57: #{dnn_forward.1} parent=1 // pred_fallthru
      _
    // Predicated region
    $region58: #{dnn_forward.1} parent=1 // pred_check
      _
    $region59: #{dnn_forward.1} parent=1 // pred_check_branch
      %110 = sbr.rel (0) target = $region61
    $region60: #{dnn_forward.1} parent=1 // pred_region
      %111 = dma.done [#allocation8], 1024
    $region61: #{dnn_forward.1} parent=1 // pred_fallthru
      _
    // Predicated region
    $region62: #{dnn_forward.1} parent=1 // pred_check
      _
    $region63: #{dnn_forward.1} parent=1 // pred_check_branch
      %113 = sbr.rel (0) target = $region65
    $region64: #{dnn_forward.1} parent=1 // pred_region
      %114 = dma.done [#allocation8], 1024
    $region65: #{dnn_forward.1} parent=1 // pred_fallthru
      _
    // Predicated region
    $region66: #{dnn_forward.1} parent=1 // pred_check
      _
    $region67: #{dnn_forward.1} parent=1 // pred_check_branch
      %116 = sbr.rel (0) target = $region69
    $region68: #{dnn_forward.1} parent=1 // pred_region
      %117 = dma.done [#allocation11], 1024
    $region69: #{dnn_forward.1} parent=1 // pred_fallthru
      _
    %v119 = vld [vmem:[#allocation2] sm:$0xff]
    %v120 = vpack.c.bf16 %v119, %v119
    %v121 = vld [vmem:[#allocation4] sm:$0xff]
    %v122 = vld [vmem:[#allocation4 + $0x8] sm:$0xff]
    %v123 = vld [vmem:[#allocation4 + $0x10] sm:$0xff]
    %v124 = vld [vmem:[#allocation4 + $0x18] sm:$0xff]
    %v125 = vld [vmem:[%s2] sm:$0x3]
    %v127 = vlaneseq
    %v128 = vshrl.u32 %v127, 7
    %v129 = vsub.s32 0, %v128
    %v130 = vrot.slane %v125, %v129
    %v131 = vlaneseq
    %v132 = vshrl.u32 %v131, 7
    %v133 = vsub.s32 1, %v132
    %v134 = vrot.slane %v125, %v133
    %v141 = vunpack.c.l.b16 %v121
    %v142 = vunpack.c.h.b16 %v121
    %v143 = vunpack.c.l.b16 %v122
    %v144 = vunpack.c.h.b16 %v122
    %v145 = vunpack.c.l.b16 %v123
    %v146 = vunpack.c.h.b16 %v123
    %v147 = vunpack.c.l.b16 %v124
    %v148 = vunpack.c.h.b16 %v124
    %v149 = vpack.c.b16 %v143, %v141
    %v150 = vpack.c.b16 %v144, %v142
    %v151 = vpack.c.b16 %v147, %v145
    %v152 = vpack.c.b16 %v148, %v146
    %vm157 = vcmask 261120
    %v159 = vsel %vm157, %v120, 0
    %161 = vmatprep.subr.bf16.mxu0 %v150
    %162 = vmatpush1.bf16.msra.mxu0 %v149
    %163 = vmatprep.subr.bf16.mxu0 %v152
    %164 = vmatpush1.bf16.msra.mxu0 %v151
    %165 = vmatprep.subr.bf16.mxu0 0
    %166 = vmatpush1.bf16.msra.mxu0 0
    %167 = vmatprep.subr.bf16.mxu0 0
    %168 = vmatpush1.bf16.msra.mxu0 0
    %169 = vmatprep.subr.bf16.mxu0 0
    %170 = vmatpush1.bf16.msra.mxu0 0
    %171 = vmatprep.subr.bf16.mxu0 0
    %172 = vmatpush1.bf16.msra.mxu0 0
    %173 = vmatprep.subr.bf16.mxu0 0
    %174 = vmatpush1.bf16.msra.mxu0 0
    %175 = vmatprep.subr.bf16.mxu0 0
    %176 = vmatpush1.bf16.msra.mxu0 0
    %177 = vmatprep.subr.bf16.mxu0 0
    %178 = vmatpush1.bf16.msra.mxu0 0
    %179 = vmatprep.subr.bf16.mxu0 0
    %180 = vmatpush1.bf16.msra.mxu0 0
    %181 = vmatprep.subr.bf16.mxu0 0
    %182 = vmatpush1.bf16.msra.mxu0 0
    %183 = vmatprep.subr.bf16.mxu0 0
    %184 = vmatpush1.bf16.msra.mxu0 0
    %185 = vmatprep.subr.bf16.mxu0 0
    %186 = vmatpush1.bf16.msra.mxu0 0
    %187 = vmatprep.subr.bf16.mxu0 0
    %188 = vmatpush1.bf16.msra.mxu0 0
    %189 = vmatprep.subr.bf16.mxu0 0
    %190 = vmatpush1.bf16.msra.mxu0 0
    %191 = vmatprep.subr.bf16.mxu0 0
    %192 = vmatpush1.bf16.msra.mxu0 0
    %193 = vmatprep.mubr.bf16.mxu0 0
    %194 = vmatmul.mubr.bf16.gmra.mrb[0].mxu0 %v159
    %v195 = vpop.f32.mrb[0].mxu0
    %v196 = vadd.f32 %v130, %v195
    %v197 = vpop.f32.mrb[0].mxu0
    %v198 = vadd.f32 %v134, %v197
    %v199 = vpop.f32.mrb[0].mxu0
    %v200 = vpop.f32.mrb[0].mxu0
    %201 = vdwg.mxu0
    %v202 = vmax.f32 %v196, 0.0
    %v203 = vmax.f32 %v198, 0.0
    %v204 = vpack.c.bf16 %v202, %v202
    %v205 = vpack.c.bf16 %v203, %v203
    %v206 = vld [vmem:[#allocation6] sm:$0xf]
    %v207 = vld [vmem:[#allocation6 + $0x4] sm:$0xf]
    %v208 = vld [vmem:[#allocation6 + $0x8] sm:$0xf]
    %v209 = vld [vmem:[#allocation6 + $0xc] sm:$0xf]
    %v210 = vld [vmem:[#allocation6 + $0x10] sm:$0xf]
    %v211 = vld [vmem:[#allocation6 + $0x14] sm:$0xf]
    %v212 = vld [vmem:[#allocation6 + $0x18] sm:$0xf]
    %v213 = vld [vmem:[#allocation6 + $0x1c] sm:$0xf]
    %v214 = vld [vmem:[#allocation6 + $0x20] sm:$0xf]
    %v215 = vld [vmem:[#allocation6 + $0x24] sm:$0xf]
    %v216 = vld [vmem:[#allocation6 + $0x28] sm:$0xf]
    %v217 = vld [vmem:[#allocation6 + $0x2c] sm:$0xf]
    %v218 = vld [vmem:[#allocation6 + $0x30] sm:$0xf]
    %v219 = vld [vmem:[#allocation6 + $0x34] sm:$0xf]
    %v220 = vld [vmem:[#allocation6 + $0x38] sm:$0xf]
    %v221 = vld [vmem:[#allocation6 + $0x3c] sm:$0xf]
    %v222 = vld [vmem:[#allocation6 + $0x40] sm:$0xf]
    %v223 = vld [vmem:[#allocation6 + $0x44] sm:$0xf]
    %v224 = vld [vmem:[#allocation6 + $0x48] sm:$0xf]
    %v225 = vld [vmem:[#allocation6 + $0x4c] sm:$0xf]
    %v226 = vld [vmem:[#allocation6 + $0x50] sm:$0xf]
    %v227 = vld [vmem:[#allocation6 + $0x54] sm:$0xf]
    %v228 = vld [vmem:[#allocation6 + $0x58] sm:$0xf]
    %v229 = vld [vmem:[#allocation6 + $0x5c] sm:$0xf]
    %v230 = vld [vmem:[#allocation6 + $0x60] sm:$0xf]
    %v231 = vld [vmem:[#allocation6 + $0x64] sm:$0xf]
    %v232 = vld [vmem:[#allocation6 + $0x68] sm:$0xf]
    %v233 = vld [vmem:[#allocation6 + $0x6c] sm:$0xf]
    %v234 = vld [vmem:[#allocation6 + $0x70] sm:$0xf]
    %v235 = vld [vmem:[#allocation6 + $0x74] sm:$0xf]
    %v236 = vld [vmem:[#allocation6 + $0x78] sm:$0xf]
    %v237 = vld [vmem:[#allocation6 + $0x7c] sm:$0xf]
    %v238 = vld [vmem:[%s4] sm:$0x1]
    %v240 = vlaneseq
    %v241 = vshrl.u32 %v240, 7
    %v242 = vsub.s32 0, %v241
    %v243 = vrot.slane %v238, %v242
    %v277 = vunpack.c.l.b16 %v206
    %v278 = vunpack.c.l.b16 %v207
    %v279 = vunpack.c.l.b16 %v208
    %v280 = vunpack.c.l.b16 %v209
    %v281 = vunpack.c.l.b16 %v210
    %v282 = vunpack.c.l.b16 %v211
    %v283 = vunpack.c.l.b16 %v212
    %v284 = vunpack.c.l.b16 %v213
    %v285 = vunpack.c.l.b16 %v214
    %v286 = vunpack.c.l.b16 %v215
    %v287 = vunpack.c.l.b16 %v216
    %v288 = vunpack.c.l.b16 %v217
    %v289 = vunpack.c.l.b16 %v218
    %v290 = vunpack.c.l.b16 %v219
    %v291 = vunpack.c.l.b16 %v220
    %v292 = vunpack.c.l.b16 %v221
    %v293 = vunpack.c.l.b16 %v222
    %v294 = vunpack.c.l.b16 %v223
    %v295 = vunpack.c.l.b16 %v224
    %v296 = vunpack.c.l.b16 %v225
    %v297 = vunpack.c.l.b16 %v226
    %v298 = vunpack.c.l.b16 %v227
    %v299 = vunpack.c.l.b16 %v228
    %v300 = vunpack.c.l.b16 %v229
    %v301 = vunpack.c.l.b16 %v230
    %v302 = vunpack.c.l.b16 %v231
    %v303 = vunpack.c.l.b16 %v232
    %v304 = vunpack.c.l.b16 %v233
    %v305 = vunpack.c.l.b16 %v234
    %v306 = vunpack.c.l.b16 %v235
    %v307 = vunpack.c.l.b16 %v236
    %v308 = vunpack.c.l.b16 %v237
    %v309 = vpack.c.b16 %v278, %v277
    %v310 = vpack.c.b16 %v280, %v279
    %v311 = vpack.c.b16 %v282, %v281
    %v312 = vpack.c.b16 %v284, %v283
    %v313 = vpack.c.b16 %v286, %v285
    %v314 = vpack.c.b16 %v288, %v287
    %v315 = vpack.c.b16 %v290, %v289
    %v316 = vpack.c.b16 %v292, %v291
    %v317 = vpack.c.b16 %v294, %v293
    %v318 = vpack.c.b16 %v296, %v295
    %v319 = vpack.c.b16 %v298, %v297
    %v320 = vpack.c.b16 %v300, %v299
    %v321 = vpack.c.b16 %v302, %v301
    %v322 = vpack.c.b16 %v304, %v303
    %v323 = vpack.c.b16 %v306, %v305
    %v324 = vpack.c.b16 %v308, %v307
    %341 = vmatprep.subr.bf16.mxu0 0
    %342 = vmatpush1.bf16.msra.mxu0 %v309
    %343 = vmatprep.subr.bf16.mxu0 0
    %344 = vmatpush1.bf16.msra.mxu0 %v310
    %345 = vmatprep.subr.bf16.mxu0 0
    %346 = vmatpush1.bf16.msra.mxu0 %v311
    %347 = vmatprep.subr.bf16.mxu0 0
    %348 = vmatpush1.bf16.msra.mxu0 %v312
    %349 = vmatprep.subr.bf16.mxu0 0
    %350 = vmatpush1.bf16.msra.mxu0 %v313
    %351 = vmatprep.subr.bf16.mxu0 0
    %352 = vmatpush1.bf16.msra.mxu0 %v314
    %353 = vmatprep.subr.bf16.mxu0 0
    %354 = vmatpush1.bf16.msra.mxu0 %v315
    %355 = vmatprep.subr.bf16.mxu0 0
    %356 = vmatpush1.bf16.msra.mxu0 %v316
    %357 = vmatprep.subr.bf16.mxu0 0
    %358 = vmatpush1.bf16.msra.mxu0 %v317
    %359 = vmatprep.subr.bf16.mxu0 0
    %360 = vmatpush1.bf16.msra.mxu0 %v318
    %361 = vmatprep.subr.bf16.mxu0 0
    %362 = vmatpush1.bf16.msra.mxu0 %v319
    %363 = vmatprep.subr.bf16.mxu0 0
    %364 = vmatpush1.bf16.msra.mxu0 %v320
    %365 = vmatprep.subr.bf16.mxu0 0
    %366 = vmatpush1.bf16.msra.mxu0 %v321
    %367 = vmatprep.subr.bf16.mxu0 0
    %368 = vmatpush1.bf16.msra.mxu0 %v322
    %369 = vmatprep.subr.bf16.mxu0 0
    %370 = vmatpush1.bf16.msra.mxu0 %v323
    %371 = vmatprep.subr.bf16.mxu0 0
    %372 = vmatpush1.bf16.msra.mxu0 %v324
    %373 = vmatprep.mubr.bf16.mxu0 %v205
    %374 = vmatmul.mubr.bf16.gmra.mrb[0].mxu0 %v204
    %v375 = vpop.f32.mrb[0].mxu0
    %v376 = vadd.f32 %v243, %v375
    %v377 = vpop.f32.mrb[0].mxu0
    %v378 = vpop.f32.mrb[0].mxu0
    %v379 = vpop.f32.mrb[0].mxu0
    %380 = vdwg.mxu0
    %v381 = vmax.f32 %v376, 0.0
    %v382 = vpack.c.bf16 %v381, %v381
    %v383 = vld [vmem:[#allocation7] sm:$0xf]
    %v384 = vld [vmem:[#allocation7 + $0x4] sm:$0xf]
    %v385 = vld [vmem:[#allocation7 + $0x8] sm:$0xf]
    %v386 = vld [vmem:[#allocation7 + $0xc] sm:$0xf]
    %v387 = vld [vmem:[#allocation7 + $0x10] sm:$0xf]
    %v388 = vld [vmem:[#allocation7 + $0x14] sm:$0xf]
    %v389 = vld [vmem:[#allocation7 + $0x18] sm:$0xf]
    %v390 = vld [vmem:[#allocation7 + $0x1c] sm:$0xf]
    %v391 = vld [vmem:[#allocation7 + $0x20] sm:$0xf]
    %v392 = vld [vmem:[#allocation7 + $0x24] sm:$0xf]
    %v393 = vld [vmem:[#allocation7 + $0x28] sm:$0xf]
    %v394 = vld [vmem:[#allocation7 + $0x2c] sm:$0xf]
    %v395 = vld [vmem:[#allocation7 + $0x30] sm:$0xf]
    %v396 = vld [vmem:[#allocation7 + $0x34] sm:$0xf]
    %v397 = vld [vmem:[#allocation7 + $0x38] sm:$0xf]
    %v398 = vld [vmem:[#allocation7 + $0x3c] sm:$0xf]
    %v399 = vld [vmem:[%s6] sm:$0x1]
    %v401 = vlaneseq
    %v402 = vshrl.u32 %v401, 7
    %v403 = vsub.s32 0, %v402
    %v404 = vrot.slane %v399, %v403
    %v422 = vunpack.c.l.b16 %v383
    %v423 = vunpack.c.l.b16 %v384
    %v424 = vunpack.c.l.b16 %v385
    %v425 = vunpack.c.l.b16 %v386
    %v426 = vunpack.c.l.b16 %v387
    %v427 = vunpack.c.l.b16 %v388
    %v428 = vunpack.c.l.b16 %v389
    %v429 = vunpack.c.l.b16 %v390
    %v430 = vunpack.c.l.b16 %v391
    %v431 = vunpack.c.l.b16 %v392
    %v432 = vunpack.c.l.b16 %v393
    %v433 = vunpack.c.l.b16 %v394
    %v434 = vunpack.c.l.b16 %v395
    %v435 = vunpack.c.l.b16 %v396
    %v436 = vunpack.c.l.b16 %v397
    %v437 = vunpack.c.l.b16 %v398
    %v438 = vpack.c.b16 %v423, %v422
    %v439 = vpack.c.b16 %v425, %v424
    %v440 = vpack.c.b16 %v427, %v426
    %v441 = vpack.c.b16 %v429, %v428
    %v442 = vpack.c.b16 %v431, %v430
    %v443 = vpack.c.b16 %v433, %v432
    %v444 = vpack.c.b16 %v435, %v434
    %v445 = vpack.c.b16 %v437, %v436
    %454 = vmatprep.subr.bf16.mxu0 0
    %455 = vmatpush1.bf16.msra.mxu0 %v438
    %456 = vmatprep.subr.bf16.mxu0 0
    %457 = vmatpush1.bf16.msra.mxu0 %v439
    %458 = vmatprep.subr.bf16.mxu0 0
    %459 = vmatpush1.bf16.msra.mxu0 %v440
    %460 = vmatprep.subr.bf16.mxu0 0
    %461 = vmatpush1.bf16.msra.mxu0 %v441
    %462 = vmatprep.subr.bf16.mxu0 0
    %463 = vmatpush1.bf16.msra.mxu0 %v442
    %464 = vmatprep.subr.bf16.mxu0 0
    %465 = vmatpush1.bf16.msra.mxu0 %v443
    %466 = vmatprep.subr.bf16.mxu0 0
    %467 = vmatpush1.bf16.msra.mxu0 %v444
    %468 = vmatprep.subr.bf16.mxu0 0
    %469 = vmatpush1.bf16.msra.mxu0 %v445
    %470 = vmatprep.subr.bf16.mxu0 0
    %471 = vmatpush1.bf16.msra.mxu0 0
    %472 = vmatprep.subr.bf16.mxu0 0
    %473 = vmatpush1.bf16.msra.mxu0 0
    %474 = vmatprep.subr.bf16.mxu0 0
    %475 = vmatpush1.bf16.msra.mxu0 0
    %476 = vmatprep.subr.bf16.mxu0 0
    %477 = vmatpush1.bf16.msra.mxu0 0
    %478 = vmatprep.subr.bf16.mxu0 0
    %479 = vmatpush1.bf16.msra.mxu0 0
    %480 = vmatprep.subr.bf16.mxu0 0
    %481 = vmatpush1.bf16.msra.mxu0 0
    %482 = vmatprep.subr.bf16.mxu0 0
    %483 = vmatpush1.bf16.msra.mxu0 0
    %484 = vmatprep.subr.bf16.mxu0 0
    %485 = vmatpush1.bf16.msra.mxu0 0
    %486 = vmatprep.mubr.bf16.mxu0 0
    %487 = vmatmul.mubr.bf16.gmra.mrb[0].mxu0 %v382
    %v488 = vpop.f32.mrb[0].mxu0
    %v489 = vadd.f32 %v404, %v488
    %v490 = vpop.f32.mrb[0].mxu0
    %v491 = vpop.f32.mrb[0].mxu0
    %v492 = vpop.f32.mrb[0].mxu0
    %493 = vdwg.mxu0
    %v494 = vmax.f32 %v489, 0.0
    %v495 = vpack.c.bf16 %v494, %v494
    %v496 = vld [vmem:[#allocation9] sm:$0xf]
    %v497 = vld [vmem:[#allocation9 + $0x4] sm:$0xf]
    %v498 = vld [vmem:[#allocation9 + $0x8] sm:$0xf]
    %v499 = vld [vmem:[#allocation9 + $0xc] sm:$0xf]
    %v500 = vld [vmem:[#allocation9 + $0x10] sm:$0xf]
    %v501 = vld [vmem:[#allocation9 + $0x14] sm:$0xf]
    %v502 = vld [vmem:[#allocation9 + $0x18] sm:$0xf]
    %v503 = vld [vmem:[#allocation9 + $0x1c] sm:$0xf]
    %v504 = vld [vmem:[#allocation9 + $0x20] sm:$0xf]
    %v505 = vld [vmem:[#allocation9 + $0x24] sm:$0xf]
    %v506 = vld [vmem:[#allocation9 + $0x28] sm:$0xf]
    %v507 = vld [vmem:[#allocation9 + $0x2c] sm:$0xf]
    %v508 = vld [vmem:[#allocation9 + $0x30] sm:$0xf]
    %v509 = vld [vmem:[#allocation9 + $0x34] sm:$0xf]
    %v510 = vld [vmem:[#allocation9 + $0x38] sm:$0xf]
    %v511 = vld [vmem:[#allocation9 + $0x3c] sm:$0xf]
    %v512 = vld [vmem:[%s8] sm:$0x1]
    %v514 = vlaneseq
    %v515 = vshrl.u32 %v514, 7
    %v516 = vsub.s32 0, %v515
    %v517 = vrot.slane %v512, %v516
    %v535 = vunpack.c.l.b16 %v496
    %v536 = vunpack.c.l.b16 %v497
    %v537 = vunpack.c.l.b16 %v498
    %v538 = vunpack.c.l.b16 %v499
    %v539 = vunpack.c.l.b16 %v500
    %v540 = vunpack.c.l.b16 %v501
    %v541 = vunpack.c.l.b16 %v502
    %v542 = vunpack.c.l.b16 %v503
    %v543 = vunpack.c.l.b16 %v504
    %v544 = vunpack.c.l.b16 %v505
    %v545 = vunpack.c.l.b16 %v506
    %v546 = vunpack.c.l.b16 %v507
    %v547 = vunpack.c.l.b16 %v508
    %v548 = vunpack.c.l.b16 %v509
    %v549 = vunpack.c.l.b16 %v510
    %v550 = vunpack.c.l.b16 %v511
    %v551 = vpack.c.b16 %v536, %v535
    %v552 = vpack.c.b16 %v538, %v537
    %v553 = vpack.c.b16 %v540, %v539
    %v554 = vpack.c.b16 %v542, %v541
    %v555 = vpack.c.b16 %v544, %v543
    %v556 = vpack.c.b16 %v546, %v545
    %v557 = vpack.c.b16 %v548, %v547
    %v558 = vpack.c.b16 %v550, %v549
    %567 = vmatprep.subr.bf16.mxu0 0
    %568 = vmatpush1.bf16.msra.mxu0 %v551
    %569 = vmatprep.subr.bf16.mxu0 0
    %570 = vmatpush1.bf16.msra.mxu0 %v552
    %571 = vmatprep.subr.bf16.mxu0 0
    %572 = vmatpush1.bf16.msra.mxu0 %v553
    %573 = vmatprep.subr.bf16.mxu0 0
    %574 = vmatpush1.bf16.msra.mxu0 %v554
    %575 = vmatprep.subr.bf16.mxu0 0
    %576 = vmatpush1.bf16.msra.mxu0 %v555
    %577 = vmatprep.subr.bf16.mxu0 0
    %578 = vmatpush1.bf16.msra.mxu0 %v556
    %579 = vmatprep.subr.bf16.mxu0 0
    %580 = vmatpush1.bf16.msra.mxu0 %v557
    %581 = vmatprep.subr.bf16.mxu0 0
    %582 = vmatpush1.bf16.msra.mxu0 %v558
    %583 = vmatprep.subr.bf16.mxu0 0
    %584 = vmatpush1.bf16.msra.mxu0 0
    %585 = vmatprep.subr.bf16.mxu0 0
    %586 = vmatpush1.bf16.msra.mxu0 0
    %587 = vmatprep.subr.bf16.mxu0 0
    %588 = vmatpush1.bf16.msra.mxu0 0
    %589 = vmatprep.subr.bf16.mxu0 0
    %590 = vmatpush1.bf16.msra.mxu0 0
    %591 = vmatprep.subr.bf16.mxu0 0
    %592 = vmatpush1.bf16.msra.mxu0 0
    %593 = vmatprep.subr.bf16.mxu0 0
    %594 = vmatpush1.bf16.msra.mxu0 0
    %595 = vmatprep.subr.bf16.mxu0 0
    %596 = vmatpush1.bf16.msra.mxu0 0
    %597 = vmatprep.subr.bf16.mxu0 0
    %598 = vmatpush1.bf16.msra.mxu0 0
    %599 = vmatprep.mubr.bf16.mxu0 0
    %600 = vmatmul.mubr.bf16.gmra.mrb[0].mxu0 %v495
    %v601 = vpop.f32.mrb[0].mxu0
    %v602 = vadd.f32 %v517, %v601
    %v603 = vpop.f32.mrb[0].mxu0
    %v604 = vpop.f32.mrb[0].mxu0
    %v605 = vpop.f32.mrb[0].mxu0
    %606 = vdwg.mxu0
    %v607 = vmax.f32 %v602, 0.0
    %v608 = vpack.c.bf16 %v607, %v607
    %v609 = vld [vmem:[#allocation10] sm:$0xf]
    %v610 = vld [vmem:[#allocation10 + $0x4] sm:$0xf]
    %v611 = vld [vmem:[#allocation10 + $0x8] sm:$0xf]
    %v612 = vld [vmem:[#allocation10 + $0xc] sm:$0xf]
    %v613 = vld [vmem:[#allocation10 + $0x10] sm:$0xf]
    %v614 = vld [vmem:[#allocation10 + $0x14] sm:$0xf]
    %v615 = vld [vmem:[#allocation10 + $0x18] sm:$0xf]
    %v616 = vld [vmem:[#allocation10 + $0x1c] sm:$0xf]
    %v617 = vld [vmem:[#allocation10 + $0x20] sm:$0xf]
    %v618 = vld [vmem:[#allocation10 + $0x24] sm:$0xf]
    %v619 = vld [vmem:[#allocation10 + $0x28] sm:$0xf]
    %v620 = vld [vmem:[#allocation10 + $0x2c] sm:$0xf]
    %v621 = vld [vmem:[#allocation10 + $0x30] sm:$0xf]
    %v622 = vld [vmem:[#allocation10 + $0x34] sm:$0xf]
    %v623 = vld [vmem:[#allocation10 + $0x38] sm:$0xf]
    %v624 = vld [vmem:[#allocation10 + $0x3c] sm:$0xf]
    %v625 = vld [vmem:[%s10] sm:$0x1]
    %v627 = vlaneseq
    %v628 = vshrl.u32 %v627, 7
    %v629 = vsub.s32 0, %v628
    %v630 = vrot.slane %v625, %v629
    %v648 = vunpack.c.l.b16 %v609
    %v649 = vunpack.c.l.b16 %v610
    %v650 = vunpack.c.l.b16 %v611
    %v651 = vunpack.c.l.b16 %v612
    %v652 = vunpack.c.l.b16 %v613
    %v653 = vunpack.c.l.b16 %v614
    %v654 = vunpack.c.l.b16 %v615
    %v655 = vunpack.c.l.b16 %v616
    %v656 = vunpack.c.l.b16 %v617
    %v657 = vunpack.c.l.b16 %v618
    %v658 = vunpack.c.l.b16 %v619
    %v659 = vunpack.c.l.b16 %v620
    %v660 = vunpack.c.l.b16 %v621
    %v661 = vunpack.c.l.b16 %v622
    %v662 = vunpack.c.l.b16 %v623
    %v663 = vunpack.c.l.b16 %v624
    %v664 = vpack.c.b16 %v649, %v648
    %v665 = vpack.c.b16 %v651, %v650
    %v666 = vpack.c.b16 %v653, %v652
    %v667 = vpack.c.b16 %v655, %v654
    %v668 = vpack.c.b16 %v657, %v656
    %v669 = vpack.c.b16 %v659, %v658
    %v670 = vpack.c.b16 %v661, %v660
    %v671 = vpack.c.b16 %v663, %v662
    %680 = vmatprep.subr.bf16.mxu0 0
    %681 = vmatpush1.bf16.msra.mxu0 %v664
    %682 = vmatprep.subr.bf16.mxu0 0
    %683 = vmatpush1.bf16.msra.mxu0 %v665
    %684 = vmatprep.subr.bf16.mxu0 0
    %685 = vmatpush1.bf16.msra.mxu0 %v666
    %686 = vmatprep.subr.bf16.mxu0 0
    %687 = vmatpush1.bf16.msra.mxu0 %v667
    %688 = vmatprep.subr.bf16.mxu0 0
    %689 = vmatpush1.bf16.msra.mxu0 %v668
    %690 = vmatprep.subr.bf16.mxu0 0
    %691 = vmatpush1.bf16.msra.mxu0 %v669
    %692 = vmatprep.subr.bf16.mxu0 0
    %693 = vmatpush1.bf16.msra.mxu0 %v670
    %694 = vmatprep.subr.bf16.mxu0 0
    %695 = vmatpush1.bf16.msra.mxu0 %v671
    %696 = vmatprep.subr.bf16.mxu0 0
    %697 = vmatpush1.bf16.msra.mxu0 0
    %698 = vmatprep.subr.bf16.mxu0 0
    %699 = vmatpush1.bf16.msra.mxu0 0
    %700 = vmatprep.subr.bf16.mxu0 0
    %701 = vmatpush1.bf16.msra.mxu0 0
    %702 = vmatprep.subr.bf16.mxu0 0
    %703 = vmatpush1.bf16.msra.mxu0 0
    %704 = vmatprep.subr.bf16.mxu0 0
    %705 = vmatpush1.bf16.msra.mxu0 0
    %706 = vmatprep.subr.bf16.mxu0 0
    %707 = vmatpush1.bf16.msra.mxu0 0
    %708 = vmatprep.subr.bf16.mxu0 0
    %709 = vmatpush1.bf16.msra.mxu0 0
    %710 = vmatprep.subr.bf16.mxu0 0
    %711 = vmatpush1.bf16.msra.mxu0 0
    %712 = vmatprep.mubr.bf16.mxu0 0
    %713 = vmatmul.mubr.bf16.gmra.mrb[0].mxu0 %v608
    %v714 = vpop.f32.mrb[0].mxu0
    %v715 = vadd.f32 %v630, %v714
    %v716 = vpop.f32.mrb[0].mxu0
    %v717 = vpop.f32.mrb[0].mxu0
    %v718 = vpop.f32.mrb[0].mxu0
    %719 = vdwg.mxu0
    %v720 = vpack.c.bf16 %v715, %v715
    %721 = vst [vmem:[%s11] sm:$0xf] %v720
    // Predicated region
    $region70: #{dnn_forward.1} parent=1 // pred_check
      _
    $region71: #{dnn_forward.1} parent=1 // pred_check_branch
      %723 = sbr.rel (0) target = $region73
    $region72: #{dnn_forward.1} parent=1 // pred_region
      _
    $region73: #{dnn_forward.1} parent=1 // pred_fallthru
      _
    // Predicated region
    $region74: #{dnn_forward.1} parent=1 // pred_check
      _
    $region75: #{dnn_forward.1} parent=1 // pred_check_branch
      %725 = sbr.rel (0) target = $region77
    $region76: #{dnn_forward.1} parent=1 // pred_region
      _
    $region77: #{dnn_forward.1} parent=1 // pred_fallthru
      _
    %726 = vsyncpa [#allocation3], 1
    %727 = vsyncpa [#allocation5], 1
    %728 = vsyncpa [#allocation8], 1
    %729 = vsyncpa [#allocation11], 1

</llo_original>
